<compile_context>
chip_gen: v7x
topology: tpu7x:2x2x1
jax: 0.10.0
libtpu: 0.0.40
codegen_flags: <defaults>
</compile_context>

<pallas_src>
import jax
import jax.numpy as jnp
from jax.experimental import pallas as pl
from jax.experimental.pallas import tpu as pltpu  # noqa: F401  (not needed at toy sizes)


def _make_mlp_kernel(hidden_size):
    """Kernel closure; `hidden_size` selects the conv1/l1 split of the fused matmul."""

    def mlp_kernel(
        x_ref,      # (B*S, D_in)        f32
        w1c_ref,    # (D_in, H + D_out)  bf16  [conv1 | l1] fused
        b1c_ref,    # (1, H + D_out)     f32   [bc1 | bl1 + bc2]
        wc2_ref,    # (H, D_out)         bf16
        wcomb_ref,  # (B*P, B*S)         bf16  block-diag of (wf @ wl2)^T
        gb_ref,     # (2, D_out)         f32   row0 = gamma, row1 = beta
        o_ref,      # (B*P, D_out)       f32
    ):
        # First stage, all batches at once: one MXU pass covers conv1 and l1.
        x = x_ref[...].astype(jnp.bfloat16)                        # (B*S, D_in)
        rc = jnp.dot(x, w1c_ref[...], preferred_element_type=jnp.float32)
        rc = rc + b1c_ref[...]                                     # (B*S, H + D_out)
        h = jnp.maximum(rc[:, :hidden_size], 0.0)                  # conv1(x) + ReLU
        residual = rc[:, hidden_size:]                             # l1(x) + (bl1 + bc2)

        # conv2 (k=1); dropout == identity in eval mode; its bias already folded.
        z = jnp.dot(h.astype(jnp.bfloat16), wc2_ref[...],
                    preferred_element_type=jnp.float32) + residual
        z = z.astype(jnp.bfloat16)                                 # (B*S, D_out)

        # permute(0,2,1) + Linear(S,P) + l2, composed and block-diagonal over
        # batch, computed transposed so no activation transpose is needed:
        #   v[b*P + p, d] = sum_s wcomb[p, s] * z[b*S + s, d]
        v = jnp.dot(wcomb_ref[...], z,
                    preferred_element_type=jnp.float32)            # (B*P, D_out)

        # LayerNorm over D_out, all f32.  (The combined bias of the two final
        # linears is constant along D_out, so it cancels here — dropped.)
        mean = jnp.mean(v, axis=-1, keepdims=True)
        centered = v - mean
        var = jnp.mean(centered * centered, axis=-1, keepdims=True)
        inv = jax.lax.rsqrt(var + 1e-5)
        out = centered * inv * gb_ref[0:1, :] + gb_ref[1:2, :]

        # D_out = 16 < 128 -> masked vst; at these toy sizes padding to 128
        # would cost more than it saves.  Pad D_out at production scale.
        o_ref[...] = out.astype(o_ref.dtype)

    return mlp_kernel


@jax.jit
def mlp_forward(x, params):
    B, S, D_in = x.shape
    H, D_out = params["wc2"].shape
    P = params["wcomb"].shape[0] // B

    x2d = x.reshape(B * S, D_in)

    # Whole-array blocks (no grid); everything stays resident in VMEM.
    full = lambda a: pl.BlockSpec(a.shape, lambda: (0, 0))

    out2d = pl.pallas_call(
        _make_mlp_kernel(H),
        out_shape=jax.ShapeDtypeStruct((B * P, D_out), x.dtype),
        in_specs=[
            full(x2d),
            full(params["w1c"]), full(params["b1c"]),
            full(params["wc2"]),
            full(params["wcomb"]),
            full(params["gb"]),
        ],
        out_specs=pl.BlockSpec((B * P, D_out), lambda: (0, 0)),
    )(x2d, params["w1c"], params["b1c"], params["wc2"], params["wcomb"], params["gb"])

    return out2d.reshape(B, P, D_out)


def init_params(key, input_size, hidden_size, output_size, seq_len, seq_len_pred, batch):
    """Deterministic PyTorch-default-style init.

    Returns (kernel_params, raw_params):
      * kernel_params: fused / composed / pre-transposed layout used by the kernel
        (bf16 matmul weights, f32 biases & LayerNorm params).
      * raw_params: plain per-layer f32 weights for the independent reference.
    """
    ks = jax.random.split(key, 5)

    def lin(k, fan_in, shape_w, shape_b):
        bound = 1.0 / jnp.sqrt(fan_in)
        kw, kb = jax.random.split(k)
        w = jax.random.uniform(kw, shape_w, jnp.float32, -bound, bound)
        b = jax.random.uniform(kb, shape_b, jnp.float32, -bound, bound)
        return w, b

    wl1, bl1 = lin(ks[0], input_size, (input_size, output_size), (output_size,))
    wc1, bc1 = lin(ks[1], input_size, (input_size, hidden_size), (hidden_size,))
    wc2, bc2 = lin(ks[2], hidden_size, (hidden_size, output_size), (output_size,))
    wf, bf = lin(ks[3], seq_len, (seq_len, seq_len_pred), (seq_len_pred,))
    wl2, bl2 = lin(ks[4], seq_len_pred, (seq_len_pred, seq_len_pred), (seq_len_pred,))
    gamma = jnp.ones((output_size,), jnp.float32)
    beta = jnp.zeros((output_size,), jnp.float32)

    raw = dict(wl1=wl1, bl1=bl1, wc1=wc1, bc1=bc1, wc2=wc2, bc2=bc2,
               wf=wf, bf=bf, wl2=wl2, bl2=bl2, gamma=gamma, beta=beta)

    bf16 = jnp.bfloat16
    # Shared-LHS fusion: one matmul covers conv1 and l1; bl1+bc2 folded into
    # the residual half of the fused bias (bc1 must stay before the ReLU).
    w1c = jnp.concatenate([wc1, wl1], axis=1).astype(bf16)            # (D_in, H+D_out)
    b1c = jnp.concatenate([bc1, bl1 + bc2], axis=0)[None, :]          # (1, H+D_out)
    # Compose the fresh Linear(S,P) with l2 (no nonlinearity between them in
    # eval mode): wcomb = wl2^T @ wf^T = (wf @ wl2)^T, shape (P, S).  The
    # combined bias (wl2^T @ bf + bl2) is constant along the LayerNorm axis
    # (D_out) and cancels exactly in the normalization, so it is dropped.
    wcomb = (wf @ wl2).T                                              # (P, S) f32
    # Block-diagonal over batch so one matmul handles all B batches at once.
    wcomb_bd = jnp.kron(jnp.eye(batch, dtype=jnp.float32), wcomb).astype(bf16)  # (B*P, B*S)
    gb = jnp.stack([gamma, beta], axis=0)                             # (2, D_out)

    kern = dict(w1c=w1c, b1c=b1c, wc2=wc2.astype(bf16), wcomb=wcomb_bd, gb=gb)
    return kern, raw


def mlp_reference_mirror(x, p):
    """Pure-JAX mirror of the kernel's exact numerics (same fusion / bf16 casts)."""
    bf16 = jnp.bfloat16
    B, S, D_in = x.shape
    H, D_out = p["wc2"].shape
    P = p["wcomb"].shape[0] // B
    x2d = x.reshape(B * S, D_in).astype(bf16)
    rc = jnp.dot(x2d, p["w1c"], preferred_element_type=jnp.float32) + p["b1c"]
    h = jnp.maximum(rc[:, :H], 0.0)
    z = (jnp.dot(h.astype(bf16), p["wc2"],
                 preferred_element_type=jnp.float32) + rc[:, H:]).astype(bf16)
    v = jnp.dot(p["wcomb"], z, preferred_element_type=jnp.float32)
    mean = v.mean(-1, keepdims=True)
    c = v - mean
    var = (c * c).mean(-1, keepdims=True)
    out = c * jax.lax.rsqrt(var + 1e-5) * p["gb"][0:1] + p["gb"][1:2]
    return out.reshape(B, P, D_out)


def mlp_reference_f32(x, r):
    """Uncomposed f32 reference following the PyTorch forward (eval mode)."""
    residual = x @ r["wl1"] + r["bl1"]                          # (B, S, D_out)
    h = jnp.maximum(x @ r["wc1"] + r["bc1"], 0.0)               # conv1 (k=1) + ReLU
    z = h @ r["wc2"] + r["bc2"] + residual                      # (B, S, D_out)
    t = jnp.einsum("bsd,sp->bdp", z, r["wf"]) + r["bf"]         # permute + Linear(S,P)
    u = jnp.einsum("bdp,pq->bdq", t, r["wl2"]) + r["bl2"]       # l2
    u = jnp.transpose(u, (0, 2, 1))                             # (B, P, D_out)
    mean = u.mean(-1, keepdims=True)
    var = ((u - mean) ** 2).mean(-1, keepdims=True)
    return (u - mean) * jax.lax.rsqrt(var + 1e-5) * r["gamma"] + r["beta"]


if __name__ == "__main__":
    # Small shapes: batch=2, seq=8, input=16, hidden=32, output=16, seq_len_pred=8
    B, S, D_IN, H, D_OUT, P = 2, 8, 16, 32, 16, 8

    key = jax.random.PRNGKey(0)
    kx, kp = jax.random.split(key)
    x = jax.random.normal(kx, (B, S, D_IN), jnp.float32)
    params, raw = init_params(kp, D_IN, H, D_OUT, S, P, B)

    out = jax.block_until_ready(mlp_forward(x, params))
    assert out.shape == (B, P, D_OUT), out.shape

    # Tight check vs a pure-JAX mirror of the kernel numerics (validates the
    # Pallas lowering itself).
    ref_mirror = mlp_reference_mirror(x, params)
    assert jnp.allclose(out, ref_mirror, atol=2e-2, rtol=2e-2), "mismatch vs mirrored reference"

    # Looser check vs the uncomposed f32 PyTorch-semantics reference (validates
    # the shared-LHS fusion, bias folding, wf/wl2 composition, dropped combined
    # bias and batch block-diagonalization; slack covers bf16 operands).
    ref_f32 = mlp_reference_f32(x, raw)
    assert jnp.allclose(out, ref_f32, atol=1e-1, rtol=1e-1), "mismatch vs f32 reference"

    print("KERNEL_OK")
</pallas_src>

<mosaic_0001>
module attributes {stable_mosaic.version = 11 : i64} {
  func.func @mlp_kernel(%arg0: memref<16x16xf32, #tpu.memory_space<vmem>>, %arg1: memref<16x48xbf16, #tpu.memory_space<vmem>>, %arg2: memref<1x48xf32, #tpu.memory_space<vmem>>, %arg3: memref<32x16xbf16, #tpu.memory_space<vmem>>, %arg4: memref<16x16xbf16, #tpu.memory_space<vmem>>, %arg5: memref<2x16xf32, #tpu.memory_space<vmem>>, %arg6: memref<16x16xf32, #tpu.memory_space<vmem>>) attributes {dimension_semantics = [], scalar_prefetch = 0 : i64, scratch_operands = 0 : i64, tpu.core_type = #tpu.core_type<tc>} {
    %c0 = arith.constant 0 : index
    %c0_0 = arith.constant 0 : index
    %0 = vector.load %arg0[%c0, %c0_0] : memref<16x16xf32, #tpu.memory_space<vmem>>, vector<16x16xf32>
    %1 = arith.truncf %0 : vector<16x16xf32> to vector<16x16xbf16>
    %c0_1 = arith.constant 0 : index
    %c0_2 = arith.constant 0 : index
    %2 = vector.load %arg1[%c0_1, %c0_2] : memref<16x48xbf16, #tpu.memory_space<vmem>>, vector<16x48xbf16>
    %cst = arith.constant dense<0.000000e+00> : vector<16x48xf32>
    %3 = tpu.matmul %1, %2, %cst {dimension_numbers = #tpu.dot_dimension_numbers<[1], [0], [0], [1], [0, 0, 1, 1], [], []>} : vector<16x16xbf16>, vector<16x48xbf16>, vector<16x48xf32> -> vector<16x48xf32>
    %c0_3 = arith.constant 0 : index
    %c0_4 = arith.constant 0 : index
    %4 = vector.load %arg2[%c0_3, %c0_4] : memref<1x48xf32, #tpu.memory_space<vmem>>, vector<1x48xf32>
    %5 = vector.broadcast %4 : vector<1x48xf32> to vector<16x48xf32>
    %6 = arith.addf %3, %5 : vector<16x48xf32>
    %7 = vector.extract_strided_slice %6 {offsets = [0, 0], sizes = [16, 32], strides = [1, 1]} : vector<16x48xf32> to vector<16x32xf32>
    %cst_5 = arith.constant 0.000000e+00 : f32
    %8 = vector.broadcast %cst_5 : f32 to vector<16x32xf32>
    %9 = arith.maximumf %7, %8 : vector<16x32xf32>
    %10 = vector.extract_strided_slice %6 {offsets = [0, 32], sizes = [16, 16], strides = [1, 1]} : vector<16x48xf32> to vector<16x16xf32>
    %11 = arith.truncf %9 : vector<16x32xf32> to vector<16x32xbf16>
    %c0_6 = arith.constant 0 : index
    %c0_7 = arith.constant 0 : index
    %12 = vector.load %arg3[%c0_6, %c0_7] : memref<32x16xbf16, #tpu.memory_space<vmem>>, vector<32x16xbf16>
    %cst_8 = arith.constant dense<0.000000e+00> : vector<16x16xf32>
    %13 = tpu.matmul %11, %12, %cst_8 {dimension_numbers = #tpu.dot_dimension_numbers<[1], [0], [0], [1], [0, 0, 1, 1], [], []>} : vector<16x32xbf16>, vector<32x16xbf16>, vector<16x16xf32> -> vector<16x16xf32>
    %14 = arith.addf %13, %10 : vector<16x16xf32>
    %15 = arith.truncf %14 : vector<16x16xf32> to vector<16x16xbf16>
    %c0_9 = arith.constant 0 : index
    %c0_10 = arith.constant 0 : index
    %16 = vector.load %arg4[%c0_9, %c0_10] : memref<16x16xbf16, #tpu.memory_space<vmem>>, vector<16x16xbf16>
    %cst_11 = arith.constant dense<0.000000e+00> : vector<16x16xf32>
    %17 = tpu.matmul %16, %15, %cst_11 {dimension_numbers = #tpu.dot_dimension_numbers<[1], [0], [0], [1], [0, 0, 1, 1], [], []>} : vector<16x16xbf16>, vector<16x16xbf16>, vector<16x16xf32> -> vector<16x16xf32>
    %cst_12 = arith.constant dense<0.000000e+00> : vector<16xf32>
    %18 = vector.multi_reduction <add>, %17, %cst_12 [1] : vector<16x16xf32> to vector<16xf32>
    %19 = vector.shape_cast %18 : vector<16xf32> to vector<16x1xf32>
    %cst_13 = arith.constant 1.600000e+01 : f32
    %20 = vector.broadcast %cst_13 : f32 to vector<16x1xf32>
    %21 = arith.divf %19, %20 : vector<16x1xf32>
    %22 = vector.broadcast %21 : vector<16x1xf32> to vector<16x16xf32>
    %23 = arith.subf %17, %22 : vector<16x16xf32>
    %24 = arith.mulf %23, %23 : vector<16x16xf32>
    %cst_14 = arith.constant dense<0.000000e+00> : vector<16xf32>
    %25 = vector.multi_reduction <add>, %24, %cst_14 [1] : vector<16x16xf32> to vector<16xf32>
    %26 = vector.shape_cast %25 : vector<16xf32> to vector<16x1xf32>
    %cst_15 = arith.constant 1.600000e+01 : f32
    %27 = vector.broadcast %cst_15 : f32 to vector<16x1xf32>
    %28 = arith.divf %26, %27 : vector<16x1xf32>
    %cst_16 = arith.constant 9.99999974E-6 : f32
    %29 = vector.broadcast %cst_16 : f32 to vector<16x1xf32>
    %30 = arith.addf %28, %29 : vector<16x1xf32>
    %31 = math.rsqrt %30 : vector<16x1xf32>
    %32 = vector.broadcast %31 : vector<16x1xf32> to vector<16x16xf32>
    %33 = arith.mulf %23, %32 : vector<16x16xf32>
    %c0_17 = arith.constant 0 : index
    %c0_18 = arith.constant 0 : index
    %34 = vector.load %arg5[%c0_17, %c0_18] : memref<2x16xf32, #tpu.memory_space<vmem>>, vector<1x16xf32>
    %35 = vector.broadcast %34 : vector<1x16xf32> to vector<16x16xf32>
    %36 = arith.mulf %33, %35 : vector<16x16xf32>
    %c1 = arith.constant 1 : index
    %c0_19 = arith.constant 0 : index
    %37 = vector.load %arg5[%c1, %c0_19] : memref<2x16xf32, #tpu.memory_space<vmem>>, vector<1x16xf32>
    %38 = vector.broadcast %37 : vector<1x16xf32> to vector<16x16xf32>
    %39 = arith.addf %36, %38 : vector<16x16xf32>
    %c0_20 = arith.constant 0 : index
    %c0_21 = arith.constant 0 : index
    %40 = vector.load %arg6[%c0_20, %c0_21] : memref<16x16xf32, #tpu.memory_space<vmem>>, vector<16x16xf32>
    tpu.vector_store %arg6[%c0_20, %c0_21], %39 {strides = array<i32>} : memref<16x16xf32, #tpu.memory_space<vmem>>, vector<16x16xf32>,
    return
  }
}

</mosaic_0001>

<llo_original>
// kernel: mlp_forward.1
$region0: #{mlp_forward.1}
  #allocation0 [shape = 'u32[]', space=smem, size = 0x4, offset = 0x4, fixed_abs, tag = 'smem constant byte address 0x4 - core index']
  #allocation1 [shape = 'u32[144,128]{1,0:T(1,128)}', space=vmem, size = 0x12000, scoped, tag = 'internal scratch']
  %s0 = inlined_call_operand.vmem [shape: f32[16,16], index: 0, kind: input, shape index: {}]
  %s1 = inlined_call_operand.vmem [shape: bf16[16,48], index: 1, kind: input, shape index: {}]
  %s2 = inlined_call_operand.hbm [shape: f32[1,48], index: 2, kind: input, shape index: {}]
  %s3 = inlined_call_operand.vmem [shape: bf16[32,16], index: 3, kind: input, shape index: {}]
  %s4 = inlined_call_operand.vmem [shape: bf16[16,16], index: 4, kind: input, shape index: {}]
  %s5 = inlined_call_operand.vmem [shape: f32[2,16], index: 5, kind: input, shape index: {}]
  %s6 = inlined_call_operand.hbm [shape: f32[16,16], index: 6, kind: output, shape index: {}]
  %s7 = sld [smem:[#allocation0]]
  $region38: #{mlp_forward.1} parent=0
    _
  %s9 = ssub.s32 1, %s7
  %s10 = scalar_select 0, %s9, %s7
  $region1: #{mlp_forward.1} parent=0
    #allocation2 [shape = 'u8[512]{0}', space=vmem, size = 0x400, scoped, tag = 'input window, operand 2, single buffered']
    #allocation3 [shape = 's32[1]{0}', space=sflag, size = 0x4, scoped, tag = 'scoped memory for mlp_forward.1']
    #allocation4 [shape = 's32[1]{0}', space=sflag, size = 0x4, scoped, tag = 'scoped memory for mlp_forward.1']
    #allocation5 [shape = 'u8[8192]{0}', space=vmem, size = 0x2000, scoped, tag = 'output window, operand 0, single buffered']
    %11 = vsyncpa [#allocation3], 0
    %12 = vsyncpa [#allocation4], 0
    // Predicated region
    $region2: #{mlp_forward.1} parent=1 // pred_check
      _
    $region3: #{mlp_forward.1} parent=1 // pred_check_branch
      %14 = sbr.rel (0) target = $region5
    $region4: #{mlp_forward.1} parent=1 // pred_region
      _
    $region5: #{mlp_forward.1} parent=1 // pred_fallthru
      _
    // Predicated region
    $region6: #{mlp_forward.1} parent=1 // pred_check
      _
    $region7: #{mlp_forward.1} parent=1 // pred_check_branch
      %16 = sbr.rel (0) target = $region9
    $region8: #{mlp_forward.1} parent=1 // pred_region
      _
    $region9: #{mlp_forward.1} parent=1 // pred_fallthru
      _
    // Predicated region
    $region10: #{mlp_forward.1} parent=1 // pred_check
      _
    $region11: #{mlp_forward.1} parent=1 // pred_check_branch
      %18 = sbr.rel (0) target = $region13
    $region12: #{mlp_forward.1} parent=1 // pred_region
      %s20 = ssub.s32 16, 16
      %21 = vsyncadd [#allocation3], %s20
      %s23 = sshll.u32 [#allocation2], 4
      %s24 = int_to_ptr.vmem [resolvable:$true] %s23
      %26 = dma.hbm_to_vmem [thread:$0]  %s2, 16, %s24, [#allocation3]
    $region13: #{mlp_forward.1} parent=1 // pred_fallthru
      _
    // Predicated region
    $region14: #{mlp_forward.1} parent=1 // pred_check
      _
    $region15: #{mlp_forward.1} parent=1 // pred_check_branch
      %28 = sbr.rel (0) target = $region17
    $region16: #{mlp_forward.1} parent=1 // pred_region
      _
    $region17: #{mlp_forward.1} parent=1 // pred_fallthru
      _
    // Predicated region
    $region18: #{mlp_forward.1} parent=1 // pred_check
      _
    $region19: #{mlp_forward.1} parent=1 // pred_check_branch
      %30 = sbr.rel (0) target = $region21
    $region20: #{mlp_forward.1} parent=1 // pred_region
      _
    $region21: #{mlp_forward.1} parent=1 // pred_fallthru
      _
    // Predicated region
    $region22: #{mlp_forward.1} parent=1 // pred_check
      _
    $region23: #{mlp_forward.1} parent=1 // pred_check_branch
      %32 = sbr.rel (0) target = $region25
    $region24: #{mlp_forward.1} parent=1 // pred_region
      _
    $region25: #{mlp_forward.1} parent=1 // pred_fallthru
      _
    // Predicated region
    $region26: #{mlp_forward.1} parent=1 // pred_check
      _
    $region27: #{mlp_forward.1} parent=1 // pred_check_branch
      %34 = sbr.rel (0) target = $region29
    $region28: #{mlp_forward.1} parent=1 // pred_region
      %35 = dma.done [#allocation3], 16
    $region29: #{mlp_forward.1} parent=1 // pred_fallthru
      _
    %v37 = vld [vmem:[%s0] sm:$0xff]
    %v38 = vld [vmem:[%s0 + $0x8] sm:$0xff]
    %v39 = vpack.c.bf16 %v38, %v37
    %v40 = vld [vmem:[%s1] sm:$0xf]
    %v41 = vld [vmem:[%s1 + $0x4] sm:$0xf]
    %v42 = vld [vmem:[#allocation2] sm:$0x1]
    %v44 = vlaneseq
    %v45 = vshrl.u32 %v44, 7
    %v46 = vsub.s32 0, %v45
    %v47 = vrot.slane %v42, %v46
    %v51 = vunpack.c.l.b16 %v40
    %v52 = vunpack.c.l.b16 %v41
    %v53 = vpack.c.b16 %v52, %v51
    %vm55 = vcmask 130048
    %v57 = vsel %vm55, %v39, 0
    %59 = vmatprep.subr.bf16.mxu0 0
    %60 = vmatpush1.bf16.msra.mxu0 %v53
    %61 = vmatprep.subr.bf16.mxu0 0
    %62 = vmatpush1.bf16.msra.mxu0 0
    %63 = vmatprep.subr.bf16.mxu0 0
    %64 = vmatpush1.bf16.msra.mxu0 0
    %65 = vmatprep.subr.bf16.mxu0 0
    %66 = vmatpush1.bf16.msra.mxu0 0
    %67 = vmatprep.subr.bf16.mxu0 0
    %68 = vmatpush1.bf16.msra.mxu0 0
    %69 = vmatprep.subr.bf16.mxu0 0
    %70 = vmatpush1.bf16.msra.mxu0 0
    %71 = vmatprep.subr.bf16.mxu0 0
    %72 = vmatpush1.bf16.msra.mxu0 0
    %73 = vmatprep.subr.bf16.mxu0 0
    %74 = vmatpush1.bf16.msra.mxu0 0
    %75 = vmatprep.subr.bf16.mxu0 0
    %76 = vmatpush1.bf16.msra.mxu0 0
    %77 = vmatprep.subr.bf16.mxu0 0
    %78 = vmatpush1.bf16.msra.mxu0 0
    %79 = vmatprep.subr.bf16.mxu0 0
    %80 = vmatpush1.bf16.msra.mxu0 0
    %81 = vmatprep.subr.bf16.mxu0 0
    %82 = vmatpush1.bf16.msra.mxu0 0
    %83 = vmatprep.subr.bf16.mxu0 0
    %84 = vmatpush1.bf16.msra.mxu0 0
    %85 = vmatprep.subr.bf16.mxu0 0
    %86 = vmatpush1.bf16.msra.mxu0 0
    %87 = vmatprep.subr.bf16.mxu0 0
    %88 = vmatpush1.bf16.msra.mxu0 0
    %89 = vmatprep.subr.bf16.mxu0 0
    %90 = vmatpush1.bf16.msra.mxu0 0
    %91 = vmatprep.mubr.bf16.mxu0 0
    %92 = vmatmul.mubr.bf16.gmra.mrb[0].mxu0 %v57
    %v93 = vpop.f32.mrb[0].mxu0
    %v94 = vadd.f32 %v47, %v93
    %v95 = vpop.f32.mrb[0].mxu0
    %v96 = vpop.f32.mrb[0].mxu0
    %v97 = vadd.f32 %v47, %v96
    %v98 = vpop.f32.mrb[0].mxu0
    %99 = vdwg.mxu0
    %v100 = vmax.f32 %v94, 0.0
    %v101 = vmax.f32 %v97, 0.0
    %v102 = vpack.c.bf16 %v101, %v100
    %v103 = vld [vmem:[%s3] sm:$0xf]
    %v104 = vld [vmem:[%s3 + $0x4] sm:$0xf]
    %v105 = vld [vmem:[%s3 + $0x8] sm:$0xf]
    %v106 = vld [vmem:[%s3 + $0xc] sm:$0xf]
    %v111 = vunpack.c.l.b16 %v103
    %v112 = vunpack.c.l.b16 %v104
    %v113 = vunpack.c.l.b16 %v105
    %v114 = vunpack.c.l.b16 %v106
    %v115 = vpack.c.b16 %v112, %v111
    %v116 = vpack.c.b16 %v114, %v113
    %121 = vrot.lane.b32.xlu0 %v94, 96
    %v122 = vpop.permute.xlu0 %121
    %123 = vrot.lane.b32.xlu0 %v97, 96
    %v124 = vpop.permute.xlu0 %123
    %vm127 = vcmask 261120
    %v129 = vsel %vm127, %v102, 0
    %131 = vmatprep.subr.bf16.mxu0 0
    %132 = vmatpush1.bf16.msra.mxu0 %v115
    %133 = vmatprep.subr.bf16.mxu0 0
    %134 = vmatpush1.bf16.msra.mxu0 %v116
    %135 = vmatprep.subr.bf16.mxu0 0
    %136 = vmatpush1.bf16.msra.mxu0 0
    %137 = vmatprep.subr.bf16.mxu0 0
    %138 = vmatpush1.bf16.msra.mxu0 0
    %139 = vmatprep.subr.bf16.mxu0 0
    %140 = vmatpush1.bf16.msra.mxu0 0
    %141 = vmatprep.subr.bf16.mxu0 0
    %142 = vmatpush1.bf16.msra.mxu0 0
    %143 = vmatprep.subr.bf16.mxu0 0
    %144 = vmatpush1.bf16.msra.mxu0 0
    %145 = vmatprep.subr.bf16.mxu0 0
    %146 = vmatpush1.bf16.msra.mxu0 0
    %147 = vmatprep.subr.bf16.mxu0 0
    %148 = vmatpush1.bf16.msra.mxu0 0
    %149 = vmatprep.subr.bf16.mxu0 0
    %150 = vmatpush1.bf16.msra.mxu0 0
    %151 = vmatprep.subr.bf16.mxu0 0
    %152 = vmatpush1.bf16.msra.mxu0 0
    %153 = vmatprep.subr.bf16.mxu0 0
    %154 = vmatpush1.bf16.msra.mxu0 0
    %155 = vmatprep.subr.bf16.mxu0 0
    %156 = vmatpush1.bf16.msra.mxu0 0
    %157 = vmatprep.subr.bf16.mxu0 0
    %158 = vmatpush1.bf16.msra.mxu0 0
    %159 = vmatprep.subr.bf16.mxu0 0
    %160 = vmatpush1.bf16.msra.mxu0 0
    %161 = vmatprep.subr.bf16.mxu0 0
    %162 = vmatpush1.bf16.msra.mxu0 0
    %163 = vmatprep.mubr.bf16.mxu0 0
    %164 = vmatmul.mubr.bf16.gmra.mrb[0].mxu0 %v129
    %v165 = vpop.f32.mrb[0].mxu0
    %v166 = vadd.f32 %v122, %v165
    %v167 = vpop.f32.mrb[0].mxu0
    %v168 = vpop.f32.mrb[0].mxu0
    %v169 = vadd.f32 %v124, %v168
    %v170 = vpop.f32.mrb[0].mxu0
    %171 = vdwg.mxu0
    %v172 = vpack.c.bf16 %v169, %v166
    %v173 = vld [vmem:[%s4] sm:$0xf]
    %v174 = vld [vmem:[%s4 + $0x4] sm:$0xf]
    %v177 = vunpack.c.l.b16 %v173
    %v178 = vunpack.c.l.b16 %v174
    %v179 = vpack.c.b16 %v178, %v177
    %v181 = vsel %vm55, %v179, 0
    %183 = vmatprep.subr.bf16.mxu0 0
    %184 = vmatpush1.bf16.msra.mxu0 %v172
    %185 = vmatprep.subr.bf16.mxu0 0
    %186 = vmatpush1.bf16.msra.mxu0 0
    %187 = vmatprep.subr.bf16.mxu0 0
    %188 = vmatpush1.bf16.msra.mxu0 0
    %189 = vmatprep.subr.bf16.mxu0 0
    %190 = vmatpush1.bf16.msra.mxu0 0
    %191 = vmatprep.subr.bf16.mxu0 0
    %192 = vmatpush1.bf16.msra.mxu0 0
    %193 = vmatprep.subr.bf16.mxu0 0
    %194 = vmatpush1.bf16.msra.mxu0 0
    %195 = vmatprep.subr.bf16.mxu0 0
    %196 = vmatpush1.bf16.msra.mxu0 0
    %197 = vmatprep.subr.bf16.mxu0 0
    %198 = vmatpush1.bf16.msra.mxu0 0
    %199 = vmatprep.subr.bf16.mxu0 0
    %200 = vmatpush1.bf16.msra.mxu0 0
    %201 = vmatprep.subr.bf16.mxu0 0
    %202 = vmatpush1.bf16.msra.mxu0 0
    %203 = vmatprep.subr.bf16.mxu0 0
    %204 = vmatpush1.bf16.msra.mxu0 0
    %205 = vmatprep.subr.bf16.mxu0 0
    %206 = vmatpush1.bf16.msra.mxu0 0
    %207 = vmatprep.subr.bf16.mxu0 0
    %208 = vmatpush1.bf16.msra.mxu0 0
    %209 = vmatprep.subr.bf16.mxu0 0
    %210 = vmatpush1.bf16.msra.mxu0 0
    %211 = vmatprep.subr.bf16.mxu0 0
    %212 = vmatpush1.bf16.msra.mxu0 0
    %213 = vmatprep.subr.bf16.mxu0 0
    %214 = vmatpush1.bf16.msra.mxu0 0
    %215 = vmatprep.mubr.bf16.mxu0 0
    %216 = vmatmul.mubr.bf16.gmra.mrb[0].mxu0 %v181
    %v217 = vpop.f32.mrb[0].mxu0
    %v218 = vadd.f32 0.0, %v217
    %v219 = vpop.f32.mrb[0].mxu0
    %v220 = vpop.f32.mrb[0].mxu0
    %v221 = vadd.f32 0.0, %v220
    %v222 = vpop.f32.mrb[0].mxu0
    %223 = vdwg.mxu0
    %v224 = vsel %vm55, %v218, 0.0
    %225 = vadd.xlane.f32.xlu0 %v224
    %v226 = vpop.xlane.xlu0 %225
    %v227 = vsel %vm55, %v221, 0.0
    %228 = vadd.xlane.f32.xlu0 %v227
    %v229 = vpop.xlane.xlu0 %228
    %v230 = vrcp.pop 16.0
    %v231 = vmul.f32 %v226, %v230
    %v232 = vmul.f32 %v229, %v230
    %v233 = vsub.f32 %v218, %v231
    %v234 = vsub.f32 %v221, %v232
    %v235 = vmul.f32 %v233, %v233
    %v236 = vmul.f32 %v234, %v234
    %v237 = vsel %vm55, %v235, 0.0
    %238 = vadd.xlane.f32.xlu0 %v237
    %v239 = vpop.xlane.xlu0 %238
    %v240 = vsel %vm55, %v236, 0.0
    %241 = vadd.xlane.f32.xlu0 %v240
    %v242 = vpop.xlane.xlu0 %241
    %v243 = vmul.f32 %v239, %v230
    %v244 = vmul.f32 %v242, %v230
    %v245 = vadd.f32 %v243, 1e-05
    %v246 = vadd.f32 %v244, 1e-05
    %v247 = vrsqrt.pop %v245
    %v248 = vrsqrt.pop %v246
    %v249 = vmul.f32 %v233, %v247
    %v250 = vmul.f32 %v234, %v248
    %v251 = vld [vmem:[%s5] sm:$0x1]
    %v252 = vlaneseq
    %v253 = vshrl.u32 %v252, 7
    %v254 = vsub.s32 0, %v253
    %v255 = vrot.slane %v251, %v254
    %v256 = vmul.f32 %v249, %v255
    %v257 = vmul.f32 %v250, %v255
    %v258 = vld [vmem:[%s5 + $0x1] sm:$0x1]
    %v259 = vlaneseq
    %v260 = vshrl.u32 %v259, 7
    %v261 = vsub.s32 0, %v260
    %v262 = vrot.slane %v258, %v261
    %v263 = vadd.f32 %v256, %v262
    %v264 = vadd.f32 %v257, %v262
    %265 = vst.msk [vmem:[#allocation5] sm:$0xff] %vm55, %v263
    %266 = vst.msk [vmem:[#allocation5 + $0x8] sm:$0xff] %vm55, %v264
    // Predicated region
    $region30: #{mlp_forward.1} parent=1 // pred_check
      _
    $region31: #{mlp_forward.1} parent=1 // pred_check_branch
      %268 = sbr.rel (0) target = $region33
    $region32: #{mlp_forward.1} parent=1 // pred_region
      %s270 = ssub.s32 256, 256
      %271 = vsyncadd [#allocation4], %s270
      %s272 = sshll.u32 [#allocation5], 4
      %s273 = int_to_ptr.vmem [resolvable:$true] %s272
      %278 = dma.vmem_to_hbm [thread:$0]  %s273, 256, %s6, [#allocation4], 128, 128, 8
    $region33: #{mlp_forward.1} parent=1 // pred_fallthru
      _
    // Predicated region
    $region34: #{mlp_forward.1} parent=1 // pred_check
      _
    $region35: #{mlp_forward.1} parent=1 // pred_check_branch
      %280 = sbr.rel (0) target = $region37
    $region36: #{mlp_forward.1} parent=1 // pred_region
      %281 = dma.done [#allocation4], 256
    $region37: #{mlp_forward.1} parent=1 // pred_fallthru
      _
    %282 = vsyncpa [#allocation3], 1
    %283 = vsyncpa [#allocation4], 1

</llo_original>
